<compile_context>
chip_gen: v7x
topology: tpu7x:2x2x1
jax: 0.10.0
libtpu: 0.0.40
codegen_flags: <defaults>
</compile_context>

<pallas_src>
import functools

import jax
import jax.numpy as jnp
from jax.experimental import pallas as pl
from jax.experimental.pallas import tpu as pltpu


def _down_kernel(x_ref, w1_ref, b1_ref, w2_ref, b2_ref, pool_ref, skip_ref,
                 *, k, W, pool):
    """One block of nb images, channel-major / spatial-on-lanes.

    x_ref:    (Cin_p, L)          L = nb*H*W (flat input grid on the lane axis)
    w*_ref:   (Cout_p, k*k*C_p)   im2col-ordered weights
    b*_ref:   (Cout_p, 1)
    skip_ref: (Cout_p, L2)        conv2 output, still on the flat input grid
    pool_ref: (Cout_p, Lp)        pool x pool window maxima on the flat grid
    """
    shift = (k - 1) * (W + 1)
    offs = [ky * W + kx for ky in range(k) for kx in range(k)]

    def conv_relu(inp, w_ref, b_ref):
        # VALID conv as a single channel-major im2col contraction.  Output
        # column j is the conv value at flat input-grid position j (valid for
        # in-image h < H_out, w < W_out; other columns are garbage but never
        # feed a valid downstream column).
        lo = inp.shape[-1] - shift
        cols = jnp.concatenate([inp[:, s:s + lo] for s in offs], axis=0)
        y = jnp.dot(w_ref[...], cols, preferred_element_type=jnp.float32)
        return jnp.maximum(y + b_ref[...], 0.0)

    x = x_ref[...]                                    # (Cin_p, L)
    y1 = conv_relu(x, w1_ref, b1_ref)                 # (Cout_p, L - shift)
    y2 = conv_relu(y1, w2_ref, b2_ref)                # (Cout_p, L - 2*shift)
    skip_ref[...] = y2.astype(skip_ref.dtype)

    # pool x pool max (floor mode), lane-dense on the flat grid: horizontal
    # pass then vertical pass of shifted maxima.  The pooled value for window
    # (ph, pw) of image n lands at column n*H*W + pool*ph*W + pool*pw; the
    # wrapper extracts those stride-`pool` positions.
    l2 = y2.shape[-1]
    lh = l2 - (pool - 1)
    hmax = y2[:, :lh]
    for d in range(1, pool):
        hmax = jnp.maximum(hmax, y2[:, d:d + lh])
    lv = lh - (pool - 1) * W
    vmax = hmax[:, :lv]
    for d in range(1, pool):
        vmax = jnp.maximum(vmax, hmax[:, d * W:d * W + lv])
    pool_ref[...] = vmax.astype(pool_ref.dtype)


def _ceil_to(x, m):
    return ((x + m - 1) // m) * m


def down_forward(x_nchw, w1, b1, w2, b2, *, pool=2, batch_block=16):
    """x_nchw: (N, Cin, H, W); weights in PyTorch layout (Cout, Cin, kH, kW)."""
    N, Cin, H, W = x_nchw.shape
    Cout, _, k, _ = w1.shape
    H1, W1 = H - k + 1, W - k + 1
    H2, W2 = H1 - k + 1, W1 - k + 1
    Hp, Wp = H2 // pool, W2 // pool
    HW = H * W

    # Channel counts padded to sublane multiples; padded channels are zero in
    # both activations and weights, so the math is exact.
    Cin_p, Cout_p = _ceil_to(Cin, 8), _ceil_to(Cout, 8)

    # nb images per grid step; pad N to a multiple of nb and keep >= 2 grid
    # steps when N >= 2 so both v7x TensorCores stay busy.
    nb = max(1, min(batch_block, (N + 1) // 2))
    if (nb * HW) % 128 != 0:
        nb = N                 # single full-array block is always a legal tile
    G = -(-N // nb)
    N_pad = G * nb

    shift = (k - 1) * (W + 1)
    L = nb * HW                          # per-step lane extent
    L2 = L - 2 * shift                   # conv2 columns kept per step
    Lp = L2 - (pool - 1) * (W + 1)       # pooled-max columns kept per step

    x = x_nchw.astype(jnp.float32)
    x = jnp.pad(x, ((0, N_pad - N), (0, Cin_p - Cin), (0, 0), (0, 0)))
    # Channel-major, spatially flattened input: DMA minor dim = nb*H*W.
    x_cm = jnp.transpose(x, (1, 0, 2, 3)).reshape(Cin_p, N_pad * HW)

    # im2col-ordered weights: row = out channel, col index = (ky, kx, cin).
    w1k = jnp.transpose(w1, (0, 2, 3, 1)).astype(jnp.float32)
    w1k = jnp.pad(w1k, ((0, Cout_p - Cout), (0, 0), (0, 0), (0, Cin_p - Cin)))
    w1k = w1k.reshape(Cout_p, k * k * Cin_p)
    w2k = jnp.transpose(w2, (0, 2, 3, 1)).astype(jnp.float32)
    w2k = jnp.pad(w2k, ((0, Cout_p - Cout), (0, 0), (0, 0), (0, Cout_p - Cout)))
    w2k = w2k.reshape(Cout_p, k * k * Cout_p)
    b1k = jnp.pad(b1.astype(jnp.float32), (0, Cout_p - Cout)).reshape(Cout_p, 1)
    b2k = jnp.pad(b2.astype(jnp.float32), (0, Cout_p - Cout)).reshape(Cout_p, 1)

    kernel = functools.partial(_down_kernel, k=k, W=W, pool=pool)
    pool_raw, skip_raw = pl.pallas_call(
        kernel,
        out_shape=(
            jax.ShapeDtypeStruct((G, Cout_p, Lp), jnp.float32),
            jax.ShapeDtypeStruct((G, Cout_p, L2), jnp.float32),
        ),
        grid_spec=pltpu.PrefetchScalarGridSpec(
            num_scalar_prefetch=0,
            grid=(G,),
            in_specs=[
                pl.BlockSpec((Cin_p, L), lambda g: (0, g)),
                pl.BlockSpec((Cout_p, k * k * Cin_p), lambda g: (0, 0)),
                pl.BlockSpec((Cout_p, 1), lambda g: (0, 0)),
                pl.BlockSpec((Cout_p, k * k * Cout_p), lambda g: (0, 0)),
                pl.BlockSpec((Cout_p, 1), lambda g: (0, 0)),
            ],
            out_specs=(
                pl.BlockSpec((None, Cout_p, Lp), lambda g: (g, 0, 0)),
                pl.BlockSpec((None, Cout_p, L2), lambda g: (g, 0, 0)),
            ),
        ),
        compiler_params=pltpu.CompilerParams(
            dimension_semantics=("parallel",)),
    )(x_cm, w1k, b1k, w2k, b2k)

    # Wrapper-side extraction (pure layout glue on tiny arrays): drop padded
    # channels, pad the ragged lane tail, unflatten to the per-image grid,
    # keep the valid region / the stride-`pool` pooled positions.
    def unflatten(raw, tail):
        raw = raw[:, :Cout]
        raw = jnp.pad(raw, ((0, 0), (0, 0), (0, tail)))
        return raw.reshape(G, Cout, nb, H, W)

    skip = unflatten(skip_raw, L - L2)[:, :, :, :H2, :W2]
    skip = jnp.transpose(skip, (0, 2, 1, 3, 4)).reshape(N_pad, Cout, H2, W2)[:N]

    pooled = unflatten(pool_raw, L - Lp)[:, :, :, 0:pool * Hp:pool, 0:pool * Wp:pool]
    pooled = jnp.transpose(pooled, (0, 2, 1, 3, 4)).reshape(N_pad, Cout, Hp, Wp)[:N]
    return pooled, skip


def down_reference(x, w1, b1, w2, b2, pool=2):
    """Pure-JAX reference mirroring the PyTorch module (NCHW)."""
    def conv_relu(inp, w, b):
        y = jax.lax.conv_general_dilated(
            inp, w, window_strides=(1, 1), padding="VALID",
            dimension_numbers=("NCHW", "OIHW", "NCHW"))
        return jax.nn.relu(y + b[None, :, None, None])

    skip = conv_relu(conv_relu(x, w1, b1), w2, b2)
    pooled = jax.lax.reduce_window(
        skip, -jnp.inf, jax.lax.max,
        window_dimensions=(1, 1, pool, pool),
        window_strides=(1, 1, pool, pool),
        padding="VALID")
    return pooled, skip


if __name__ == "__main__":
    key = jax.random.PRNGKey(0)
    kx, kw1, kb1, kw2, kb2 = jax.random.split(key, 5)

    # Shapes consistent with the module: Down(in=4, out=8, kernel_size=3).
    N, Cin, H, W = 2, 4, 16, 16
    Cout, ksz = 8, 3

    x = jax.random.normal(kx, (N, Cin, H, W), jnp.float32)
    w1 = jax.random.normal(kw1, (Cout, Cin, ksz, ksz), jnp.float32) * 0.1
    b1 = jax.random.normal(kb1, (Cout,), jnp.float32) * 0.1
    w2 = jax.random.normal(kw2, (Cout, Cout, ksz, ksz), jnp.float32) * 0.1
    b2 = jax.random.normal(kb2, (Cout,), jnp.float32) * 0.1

    pooled, skip = jax.jit(down_forward)(x, w1, b1, w2, b2)
    jax.block_until_ready((pooled, skip))

    ref_pooled, ref_skip = down_reference(x, w1, b1, w2, b2)
    assert pooled.shape == ref_pooled.shape, (pooled.shape, ref_pooled.shape)
    assert skip.shape == ref_skip.shape, (skip.shape, ref_skip.shape)
    assert jnp.allclose(pooled, ref_pooled, atol=1e-4, rtol=1e-4)
    assert jnp.allclose(skip, ref_skip, atol=1e-4, rtol=1e-4)
    print("KERNEL_OK")
</pallas_src>

<mosaic_0001>
module attributes {stable_mosaic.version = 11 : i64} {
  func.func @_down_kernel(%arg0: i32, %arg1: memref<8x256xf32, #tpu.memory_space<vmem>>, %arg2: memref<8x72xf32, #tpu.memory_space<vmem>>, %arg3: memref<8x1xf32, #tpu.memory_space<vmem>>, %arg4: memref<8x72xf32, #tpu.memory_space<vmem>>, %arg5: memref<8x1xf32, #tpu.memory_space<vmem>>, %arg6: memref<1x8x171xf32, #tpu.memory_space<vmem>>, %arg7: memref<1x8x188xf32, #tpu.memory_space<vmem>>) attributes {dimension_semantics = [#tpu.dimension_semantics<parallel>], iteration_bounds = array<i64: 2>, scalar_prefetch = 0 : i64, scratch_operands = 0 : i64, tpu.core_type = #tpu.core_type<tc>, window_params = [{transform_indices = @transform_0, window_bounds = array<i64: 8, 256>}, {pipeline_mode = #tpu.pipeline_mode<synchronous>, transform_indices = @transform_1, window_bounds = array<i64: 8, 72>}, {pipeline_mode = #tpu.pipeline_mode<synchronous>, transform_indices = @transform_2, window_bounds = array<i64: 8, 1>}, {pipeline_mode = #tpu.pipeline_mode<synchronous>, transform_indices = @transform_3, window_bounds = array<i64: 8, 72>}, {pipeline_mode = #tpu.pipeline_mode<synchronous>, transform_indices = @transform_4, window_bounds = array<i64: 8, 1>}, {transform_indices = @transform_5, window_bounds = array<i64: 1, 8, 171>}, {transform_indices = @transform_6, window_bounds = array<i64: 1, 8, 188>}]} {
    %c0 = arith.constant 0 : index
    %c0_0 = arith.constant 0 : index
    %0 = vector.load %arg1[%c0, %c0_0] : memref<8x256xf32, #tpu.memory_space<vmem>>, vector<8x256xf32>
    %1 = vector.extract_strided_slice %0 {offsets = [0, 0], sizes = [8, 222], strides = [1, 1]} : vector<8x256xf32> to vector<8x222xf32>
    %2 = vector.extract_strided_slice %0 {offsets = [0, 1], sizes = [8, 222], strides = [1, 1]} : vector<8x256xf32> to vector<8x222xf32>
    %3 = vector.extract_strided_slice %0 {offsets = [0, 2], sizes = [8, 222], strides = [1, 1]} : vector<8x256xf32> to vector<8x222xf32>
    %4 = vector.extract_strided_slice %0 {offsets = [0, 16], sizes = [8, 222], strides = [1, 1]} : vector<8x256xf32> to vector<8x222xf32>
    %5 = vector.extract_strided_slice %0 {offsets = [0, 17], sizes = [8, 222], strides = [1, 1]} : vector<8x256xf32> to vector<8x222xf32>
    %6 = vector.extract_strided_slice %0 {offsets = [0, 18], sizes = [8, 222], strides = [1, 1]} : vector<8x256xf32> to vector<8x222xf32>
    %7 = vector.extract_strided_slice %0 {offsets = [0, 32], sizes = [8, 222], strides = [1, 1]} : vector<8x256xf32> to vector<8x222xf32>
    %8 = vector.extract_strided_slice %0 {offsets = [0, 33], sizes = [8, 222], strides = [1, 1]} : vector<8x256xf32> to vector<8x222xf32>
    %9 = vector.extract_strided_slice %0 {offsets = [0, 34], sizes = [8, 222], strides = [1, 1]} : vector<8x256xf32> to vector<8x222xf32>
    %10 = tpu.concatenate %1, %2, %3, %4, %5, %6, %7, %8, %9 in 0 : vector<8x222xf32>, vector<8x222xf32>, vector<8x222xf32>, vector<8x222xf32>, vector<8x222xf32>, vector<8x222xf32>, vector<8x222xf32>, vector<8x222xf32>, vector<8x222xf32> -> vector<72x222xf32>
    %c0_1 = arith.constant 0 : index
    %c0_2 = arith.constant 0 : index
    %11 = vector.load %arg2[%c0_1, %c0_2] : memref<8x72xf32, #tpu.memory_space<vmem>>, vector<8x72xf32>
    %cst = arith.constant dense<0.000000e+00> : vector<8x222xf32>
    %12 = tpu.matmul %11, %10, %cst {dimension_numbers = #tpu.dot_dimension_numbers<[1], [0], [0], [1], [0, 0, 1, 1], [], []>} : vector<8x72xf32>, vector<72x222xf32>, vector<8x222xf32> -> vector<8x222xf32>
    %c0_3 = arith.constant 0 : index
    %c0_4 = arith.constant 0 : index
    %13 = vector.load %arg3[%c0_3, %c0_4] : memref<8x1xf32, #tpu.memory_space<vmem>>, vector<8x1xf32>
    %14 = vector.broadcast %13 : vector<8x1xf32> to vector<8x222xf32>
    %15 = arith.addf %12, %14 : vector<8x222xf32>
    %cst_5 = arith.constant 0.000000e+00 : f32
    %16 = vector.broadcast %cst_5 : f32 to vector<8x222xf32>
    %17 = arith.maximumf %15, %16 : vector<8x222xf32>
    %18 = vector.extract_strided_slice %17 {offsets = [0, 0], sizes = [8, 188], strides = [1, 1]} : vector<8x222xf32> to vector<8x188xf32>
    %19 = vector.extract_strided_slice %17 {offsets = [0, 1], sizes = [8, 188], strides = [1, 1]} : vector<8x222xf32> to vector<8x188xf32>
    %20 = vector.extract_strided_slice %17 {offsets = [0, 2], sizes = [8, 188], strides = [1, 1]} : vector<8x222xf32> to vector<8x188xf32>
    %21 = vector.extract_strided_slice %17 {offsets = [0, 16], sizes = [8, 188], strides = [1, 1]} : vector<8x222xf32> to vector<8x188xf32>
    %22 = vector.extract_strided_slice %17 {offsets = [0, 17], sizes = [8, 188], strides = [1, 1]} : vector<8x222xf32> to vector<8x188xf32>
    %23 = vector.extract_strided_slice %17 {offsets = [0, 18], sizes = [8, 188], strides = [1, 1]} : vector<8x222xf32> to vector<8x188xf32>
    %24 = vector.extract_strided_slice %17 {offsets = [0, 32], sizes = [8, 188], strides = [1, 1]} : vector<8x222xf32> to vector<8x188xf32>
    %25 = vector.extract_strided_slice %17 {offsets = [0, 33], sizes = [8, 188], strides = [1, 1]} : vector<8x222xf32> to vector<8x188xf32>
    %26 = vector.extract_strided_slice %17 {offsets = [0, 34], sizes = [8, 188], strides = [1, 1]} : vector<8x222xf32> to vector<8x188xf32>
    %27 = tpu.concatenate %18, %19, %20, %21, %22, %23, %24, %25, %26 in 0 : vector<8x188xf32>, vector<8x188xf32>, vector<8x188xf32>, vector<8x188xf32>, vector<8x188xf32>, vector<8x188xf32>, vector<8x188xf32>, vector<8x188xf32>, vector<8x188xf32> -> vector<72x188xf32>
    %c0_6 = arith.constant 0 : index
    %c0_7 = arith.constant 0 : index
    %28 = vector.load %arg4[%c0_6, %c0_7] : memref<8x72xf32, #tpu.memory_space<vmem>>, vector<8x72xf32>
    %cst_8 = arith.constant dense<0.000000e+00> : vector<8x188xf32>
    %29 = tpu.matmul %28, %27, %cst_8 {dimension_numbers = #tpu.dot_dimension_numbers<[1], [0], [0], [1], [0, 0, 1, 1], [], []>} : vector<8x72xf32>, vector<72x188xf32>, vector<8x188xf32> -> vector<8x188xf32>
    %c0_9 = arith.constant 0 : index
    %c0_10 = arith.constant 0 : index
    %30 = vector.load %arg5[%c0_9, %c0_10] : memref<8x1xf32, #tpu.memory_space<vmem>>, vector<8x1xf32>
    %31 = vector.broadcast %30 : vector<8x1xf32> to vector<8x188xf32>
    %32 = arith.addf %29, %31 : vector<8x188xf32>
    %cst_11 = arith.constant 0.000000e+00 : f32
    %33 = vector.broadcast %cst_11 : f32 to vector<8x188xf32>
    %34 = arith.maximumf %32, %33 : vector<8x188xf32>
    %c0_12 = arith.constant 0 : index
    %c0_13 = arith.constant 0 : index
    %c0_14 = arith.constant 0 : index
    %35 = vector.load %arg7[%c0_12, %c0_13, %c0_14] : memref<1x8x188xf32, #tpu.memory_space<vmem>>, vector<1x8x188xf32>
    %36 = vector.shape_cast %35 : vector<1x8x188xf32> to vector<8x188xf32>
    %37 = vector.shape_cast %34 : vector<8x188xf32> to vector<1x8x188xf32>
    tpu.vector_store %arg7[%c0_12, %c0_13, %c0_14], %37 {strides = array<i32>} : memref<1x8x188xf32, #tpu.memory_space<vmem>>, vector<1x8x188xf32>,
    %38 = vector.extract_strided_slice %34 {offsets = [0, 0], sizes = [8, 187], strides = [1, 1]} : vector<8x188xf32> to vector<8x187xf32>
    %39 = vector.extract_strided_slice %34 {offsets = [0, 1], sizes = [8, 187], strides = [1, 1]} : vector<8x188xf32> to vector<8x187xf32>
    %40 = arith.maximumf %38, %39 : vector<8x187xf32>
    %41 = vector.extract_strided_slice %40 {offsets = [0, 0], sizes = [8, 171], strides = [1, 1]} : vector<8x187xf32> to vector<8x171xf32>
    %42 = vector.extract_strided_slice %40 {offsets = [0, 16], sizes = [8, 171], strides = [1, 1]} : vector<8x187xf32> to vector<8x171xf32>
    %43 = arith.maximumf %41, %42 : vector<8x171xf32>
    %c0_15 = arith.constant 0 : index
    %c0_16 = arith.constant 0 : index
    %c0_17 = arith.constant 0 : index
    %44 = vector.load %arg6[%c0_15, %c0_16, %c0_17] : memref<1x8x171xf32, #tpu.memory_space<vmem>>, vector<1x8x171xf32>
    %45 = vector.shape_cast %44 : vector<1x8x171xf32> to vector<8x171xf32>
    %46 = vector.shape_cast %43 : vector<8x171xf32> to vector<1x8x171xf32>
    tpu.vector_store %arg6[%c0_15, %c0_16, %c0_17], %46 {strides = array<i32>} : memref<1x8x171xf32, #tpu.memory_space<vmem>>, vector<1x8x171xf32>,
    return
  }
  func.func @transform_0(%arg0: i32) -> (i32, i32) {
    %c0_i32 = arith.constant 0 : i32
    %c0_i32_0 = arith.constant 0 : i32
    return %c0_i32, %arg0 : i32, i32
  }
  func.func @transform_1(%arg0: i32) -> (i32, i32) {
    %c0_i32 = arith.constant 0 : i32
    %c0_i32_0 = arith.constant 0 : i32
    %c0_i32_1 = arith.constant 0 : i32
    return %c0_i32, %c0_i32_0 : i32, i32
  }
  func.func @transform_2(%arg0: i32) -> (i32, i32) {
    %c0_i32 = arith.constant 0 : i32
    %c0_i32_0 = arith.constant 0 : i32
    %c0_i32_1 = arith.constant 0 : i32
    return %c0_i32, %c0_i32_0 : i32, i32
  }
  func.func @transform_3(%arg0: i32) -> (i32, i32) {
    %c0_i32 = arith.constant 0 : i32
    %c0_i32_0 = arith.constant 0 : i32
    %c0_i32_1 = arith.constant 0 : i32
    return %c0_i32, %c0_i32_0 : i32, i32
  }
  func.func @transform_4(%arg0: i32) -> (i32, i32) {
    %c0_i32 = arith.constant 0 : i32
    %c0_i32_0 = arith.constant 0 : i32
    %c0_i32_1 = arith.constant 0 : i32
    return %c0_i32, %c0_i32_0 : i32, i32
  }
  func.func @transform_5(%arg0: i32) -> (i32, i32, i32) {
    %c0_i32 = arith.constant 0 : i32
    %c0_i32_0 = arith.constant 0 : i32
    %c0_i32_1 = arith.constant 0 : i32
    return %arg0, %c0_i32, %c0_i32_0 : i32, i32, i32
  }
  func.func @transform_6(%arg0: i32) -> (i32, i32, i32) {
    %c0_i32 = arith.constant 0 : i32
    %c0_i32_0 = arith.constant 0 : i32
    %c0_i32_1 = arith.constant 0 : i32
    return %arg0, %c0_i32, %c0_i32_0 : i32, i32, i32
  }
}

</mosaic_0001>

<llo_original>
// kernel: down_forward.1
$region0: #{down_forward.1}
  #allocation0 [shape = 'u32[]', space=smem, size = 0x4, offset = 0x4, fixed_abs, tag = 'smem constant byte address 0x4 - core index']
  #allocation1 [shape = 'u32[144,128]{1,0:T(1,128)}', space=vmem, size = 0x12000, scoped, tag = 'internal scratch']
  %s0 = inlined_call_operand.vmem [shape: f32[8,512], index: 0, kind: input, shape index: {}]
  %s1 = inlined_call_operand.vmem [shape: f32[8,72], index: 1, kind: input, shape index: {}]
  %s2 = inlined_call_operand.vmem [shape: f32[8,1], index: 2, kind: input, shape index: {}]
  %s3 = inlined_call_operand.vmem [shape: f32[8,72], index: 3, kind: input, shape index: {}]
  %s4 = inlined_call_operand.vmem [shape: f32[8,1], index: 4, kind: input, shape index: {}]
  %s5 = inlined_call_operand.vmem [shape: f32[2,8,171], index: 5, kind: output, shape index: {0}]
  %s6 = inlined_call_operand.vmem [shape: f32[2,8,188], index: 6, kind: output, shape index: {1}]
  %7 = xla_tuple %s5, %s6
  %s8 = sld [smem:[#allocation0]]
  $region61: #{down_forward.1} parent=0
    _
  %s10 = ssub.s32 1, %s8
  %s11 = scalar_select 0, %s10, %s8
  loop: start=0, step=1, limit=4
  $region2: #{down_forward.1} parent=0 // loop_pre_header
    _
  $region3: #{down_forward.1} parent=0 // loop_header
    %s13 = sphi 0, %s17
    %p14 = scmp.ge.s32.totalorder %s13, 4
    %s23 = sphi 0, %s25
    %s26 = sphi 0, %s23
    %s27 = sphi 0, %s26
    %s43 = sphi 0, %s27
    %s47 = sphi 0, %s47
    %s49 = sphi 0, %s47
    %s50 = sphi 0, %s49
    %s64 = sphi 0, %s50
    %s68 = sphi 0, %s68
    %s70 = sphi 0, %s68
    %s71 = sphi 0, %s70
    %s85 = sphi 0, %s71
    %s89 = sphi 0, %s89
    %s91 = sphi 0, %s89
    %s92 = sphi 0, %s91
    %s106 = sphi 0, %s92
    %s110 = sphi 0, %s110
    %s112 = sphi 0, %s110
    %s113 = sphi 0, %s112
    %s127 = sphi 0, %s113
    %s133 = sphi 0, %s135
    %s136 = sphi 0, %s133
    %s137 = sphi 0, %s136
    %s153 = sphi 0, %s137
    %s159 = sphi 0, %s161
    %s162 = sphi 0, %s159
    %s163 = sphi 0, %s162
    %s179 = sphi 0, %s163
  $region4: #{down_forward.1} parent=0 // loop_header_branch
    %16 = sbr.rel (%p14) target = $region8
  $region5: #{down_forward.1} parent=0 // loop_body
    %s18 = ssub.s32 %s13, 1
    %s19 = ssub.s32 %s13, 2
    %s20 = sadd.s32 %s13, 1
    %s21 = ssub.s32 %s13, %s20
    %p22 = scmp.eq.s32.totalorder %s21, 0
    %s24 = sadd.s32 %s23, 1
    %s25 = scalar_select %p22, %s23, %s24
    %p28 = pneg %p22
    %p29 = scmp.eq.s32.totalorder %s13, 1
    %p30 = por %p28, %p29
    %p31 = scmp.ne.s32.totalorder %s23, %s26
    %p32 = scmp.eq.s32.totalorder %s13, 0
    %p33 = por %p31, %p32
    %p34 = scmp.ne.s32.totalorder %s23, %s26
    %p35 = scmp.eq.s32.totalorder %s18, 1
    %p36 = por %p34, %p35
    %p37 = scmp.ne.s32.totalorder %s26, %s27
    %p38 = scmp.eq.s32.totalorder %s18, 0
    %p39 = por %p37, %p38
    %p40 = scmp.ne.s32.totalorder %s26, %s27
    %p41 = scmp.eq.s32.totalorder %s19, 1
    %p42 = por %p40, %p41
    %p44 = scmp.ne.s32.totalorder %s27, %s43
    %p45 = scmp.eq.s32.totalorder %s19, 0
    %p46 = por %p44, %p45
    %s48 = sadd.s32 %s47, 1
    %p51 = scmp.eq.s32.totalorder %s13, 1
    %p52 = scmp.ne.s32.totalorder %s47, %s49
    %p53 = scmp.eq.s32.totalorder %s13, 0
    %p54 = por %p52, %p53
    %p55 = scmp.ne.s32.totalorder %s47, %s49
    %p56 = scmp.eq.s32.totalorder %s18, 1
    %p57 = por %p55, %p56
    %p58 = scmp.ne.s32.totalorder %s49, %s50
    %p59 = scmp.eq.s32.totalorder %s18, 0
    %p60 = por %p58, %p59
    %p61 = scmp.ne.s32.totalorder %s49, %s50
    %p62 = scmp.eq.s32.totalorder %s19, 1
    %p63 = por %p61, %p62
    %p65 = scmp.ne.s32.totalorder %s50, %s64
    %p66 = scmp.eq.s32.totalorder %s19, 0
    %p67 = por %p65, %p66
    %s69 = sadd.s32 %s68, 1
    %p72 = scmp.eq.s32.totalorder %s13, 1
    %p73 = scmp.ne.s32.totalorder %s68, %s70
    %p74 = scmp.eq.s32.totalorder %s13, 0
    %p75 = por %p73, %p74
    %p76 = scmp.ne.s32.totalorder %s68, %s70
    %p77 = scmp.eq.s32.totalorder %s18, 1
    %p78 = por %p76, %p77
    %p79 = scmp.ne.s32.totalorder %s70, %s71
    %p80 = scmp.eq.s32.totalorder %s18, 0
    %p81 = por %p79, %p80
    %p82 = scmp.ne.s32.totalorder %s70, %s71
    %p83 = scmp.eq.s32.totalorder %s19, 1
    %p84 = por %p82, %p83
    %p86 = scmp.ne.s32.totalorder %s71, %s85
    %p87 = scmp.eq.s32.totalorder %s19, 0
    %p88 = por %p86, %p87
    %s90 = sadd.s32 %s89, 1
    %p93 = scmp.eq.s32.totalorder %s13, 1
    %p94 = scmp.ne.s32.totalorder %s89, %s91
    %p95 = scmp.eq.s32.totalorder %s13, 0
    %p96 = por %p94, %p95
    %p97 = scmp.ne.s32.totalorder %s89, %s91
    %p98 = scmp.eq.s32.totalorder %s18, 1
    %p99 = por %p97, %p98
    %p100 = scmp.ne.s32.totalorder %s91, %s92
    %p101 = scmp.eq.s32.totalorder %s18, 0
    %p102 = por %p100, %p101
    %p103 = scmp.ne.s32.totalorder %s91, %s92
    %p104 = scmp.eq.s32.totalorder %s19, 1
    %p105 = por %p103, %p104
    %p107 = scmp.ne.s32.totalorder %s92, %s106
    %p108 = scmp.eq.s32.totalorder %s19, 0
    %p109 = por %p107, %p108
    %s111 = sadd.s32 %s110, 1
    %p114 = scmp.eq.s32.totalorder %s13, 1
    %p115 = scmp.ne.s32.totalorder %s110, %s112
    %p116 = scmp.eq.s32.totalorder %s13, 0
    %p117 = por %p115, %p116
    %p118 = scmp.ne.s32.totalorder %s110, %s112
    %p119 = scmp.eq.s32.totalorder %s18, 1
    %p120 = por %p118, %p119
    %p121 = scmp.ne.s32.totalorder %s112, %s113
    %p122 = scmp.eq.s32.totalorder %s18, 0
    %p123 = por %p121, %p122
    %p124 = scmp.ne.s32.totalorder %s112, %s113
    %p125 = scmp.eq.s32.totalorder %s19, 1
    %p126 = por %p124, %p125
    %p128 = scmp.ne.s32.totalorder %s113, %s127
    %p129 = scmp.eq.s32.totalorder %s19, 0
    %p130 = por %p128, %p129
    %s131 = ssub.s32 %s13, %s20
    %p132 = scmp.eq.s32.totalorder %s131, 0
    %s134 = sadd.s32 %s133, 1
    %s135 = scalar_select %p132, %s133, %s134
    %p138 = pneg %p132
    %p139 = scmp.eq.s32.totalorder %s13, 1
    %p140 = por %p138, %p139
    %p141 = scmp.ne.s32.totalorder %s133, %s136
    %p142 = scmp.eq.s32.totalorder %s13, 0
    %p143 = por %p141, %p142
    %p144 = scmp.ne.s32.totalorder %s133, %s136
    %p145 = scmp.eq.s32.totalorder %s18, 1
    %p146 = por %p144, %p145
    %p147 = scmp.ne.s32.totalorder %s136, %s137
    %p148 = scmp.eq.s32.totalorder %s18, 0
    %p149 = por %p147, %p148
    %p150 = scmp.ne.s32.totalorder %s136, %s137
    %p151 = scmp.eq.s32.totalorder %s19, 1
    %p152 = por %p150, %p151
    %p154 = scmp.ne.s32.totalorder %s137, %s153
    %p155 = scmp.eq.s32.totalorder %s19, 0
    %p156 = por %p154, %p155
    %s157 = ssub.s32 %s13, %s20
    %p158 = scmp.eq.s32.totalorder %s157, 0
    %s160 = sadd.s32 %s159, 1
    %s161 = scalar_select %p158, %s159, %s160
    %p164 = pneg %p158
    %p165 = scmp.eq.s32.totalorder %s13, 1
    %p166 = por %p164, %p165
    %p167 = scmp.ne.s32.totalorder %s159, %s162
    %p168 = scmp.eq.s32.totalorder %s13, 0
    %p169 = por %p167, %p168
    %p170 = scmp.ne.s32.totalorder %s159, %s162
    %p171 = scmp.eq.s32.totalorder %s18, 1
    %p172 = por %p170, %p171
    %p173 = scmp.ne.s32.totalorder %s162, %s163
    %p174 = scmp.eq.s32.totalorder %s18, 0
    %p175 = por %p173, %p174
    %p176 = scmp.ne.s32.totalorder %s162, %s163
    %p177 = scmp.eq.s32.totalorder %s19, 1
    %p178 = por %p176, %p177
    %p180 = scmp.ne.s32.totalorder %s163, %s179
    %p181 = scmp.eq.s32.totalorder %s19, 0
    %p182 = por %p180, %p181
    %p183 = scmp.le.s32.totalorder 1, %s13
    %p184 = scmp.lt.s32.totalorder %s13, 3
    %p185 = pnand %p183, %p184
    %p186 = pneg %p185
    // Predicated region
    $region9: #{down_forward.1} parent=5 // pred_check
      _
    $region10: #{down_forward.1} parent=5 // pred_check_branch
      %188 = sbr.rel (%p185) target = $region12
    $region11: #{down_forward.1} parent=5 // pred_region
      %s189 = ssub.s32 %s13, 1
      // Predicated region
      $region13: #{down_forward.1} parent=11 // pred_check
        %p190 = pneg %p60
      $region14: #{down_forward.1} parent=11 // pred_check_branch
        %192 = sbr.rel (%p190) target = $region16
      $region15: #{down_forward.1} parent=11 // pred_region
        _
      $region16: #{down_forward.1} parent=11 // pred_fallthru
        _
      // Predicated region
      $region17: #{down_forward.1} parent=11 // pred_check
        %p193 = pneg %p81
      $region18: #{down_forward.1} parent=11 // pred_check_branch
        %195 = sbr.rel (%p193) target = $region20
      $region19: #{down_forward.1} parent=11 // pred_region
        _
      $region20: #{down_forward.1} parent=11 // pred_fallthru
        _
      // Predicated region
      $region21: #{down_forward.1} parent=11 // pred_check
        %p196 = pneg %p102
      $region22: #{down_forward.1} parent=11 // pred_check_branch
        %198 = sbr.rel (%p196) target = $region24
      $region23: #{down_forward.1} parent=11 // pred_region
        _
      $region24: #{down_forward.1} parent=11 // pred_fallthru
        _
      // Predicated region
      $region25: #{down_forward.1} parent=11 // pred_check
        %p199 = pneg %p123
      $region26: #{down_forward.1} parent=11 // pred_check_branch
        %201 = sbr.rel (%p199) target = $region28
      $region27: #{down_forward.1} parent=11 // pred_region
        _
      $region28: #{down_forward.1} parent=11 // pred_fallthru
        _
    $region12: #{down_forward.1} parent=5 // pred_fallthru
      _
    %p202 = scmp.lt.s32.totalorder %s13, 2
    // Predicated region
    $region29: #{down_forward.1} parent=5 // pred_check
      %p203 = pneg %p202
    $region30: #{down_forward.1} parent=5 // pred_check_branch
      %205 = sbr.rel (%p203) target = $region32
    $region31: #{down_forward.1} parent=5 // pred_region
      // Predicated region
      $region33: #{down_forward.1} parent=31 // pred_check
        %p206 = pneg %p33
      $region34: #{down_forward.1} parent=31 // pred_check_branch
        %208 = sbr.rel (%p206) target = $region36
      $region35: #{down_forward.1} parent=31 // pred_region
        %s209 = smul.u32 2, %s13
        %p210 = scmp.lt.s32.totalorder %s209, 3
        %s211 = scalar_select %p210, %s209, 3
        %s212 = smul.addr %s211, 8
        %s213 = scalar_lea.vmem %s0, %s212
        %s214 = smul.u32 2, %s13
      $region36: #{down_forward.1} parent=31 // pred_fallthru
        _
    $region32: #{down_forward.1} parent=5 // pred_fallthru
      _
    %p215 = scmp.le.s32.totalorder 1, %s13
    %p216 = scmp.lt.s32.totalorder %s13, 3
    %p217 = pnand %p215, %p216
    %p218 = pneg %p217
    // Predicated region
    $region37: #{down_forward.1} parent=5 // pred_check
      _
    $region38: #{down_forward.1} parent=5 // pred_check_branch
      %220 = sbr.rel (%p217) target = $region40
    $region39: #{down_forward.1} parent=5 // pred_region
      %s221 = ssub.s32 %s13, 1
      %s222 = smul.u32 2, %s18
      %p223 = scmp.lt.s32.totalorder %s222, 3
      %s224 = scalar_select %p223, %s222, 3
      %s225 = smul.addr %s224, 8
      %s226 = scalar_lea.vmem %s0, %s225
      %p227 = pneg %p39
      %p228 = pneg %p36
      %p229 = pneg %p60
      %p230 = pneg %p57
      %p231 = pneg %p81
      %p232 = pneg %p78
      %p233 = pneg %p102
      %p234 = pneg %p99
      %p235 = pneg %p123
      %p236 = pneg %p120
      %p237 = pneg %p149
      %p238 = pneg %p146
      %p239 = scmp.lt.s32.totalorder %s18, 1
      %s240 = scalar_select %p239, %s18, 1
      %s241 = smul.addr %s240, 2
      %s242 = smul.addr %s241, 8
      %s243 = scalar_lea.vmem %s5, %s242
      %p244 = pneg %p175
      %p245 = pneg %p172
      %p246 = scmp.lt.s32.totalorder %s18, 1
      %s247 = scalar_select %p246, %s18, 1
      %s248 = smul.addr %s247, 2
      %s249 = smul.addr %s248, 8
      %s250 = scalar_lea.vmem %s6, %s249
      %s251 = smul.u32 2, %s18
      %p252 = scmp.lt.s32.totalorder %s251, 3
      %s253 = scalar_select %p252, %s251, 3
      %s254 = smul.addr %s253, 8
      %s255 = scalar_lea.vmem %s0, %s254
      %s256 = smul.u32 2, %s18
      %p257 = scmp.lt.s32.totalorder %s18, 1
      %s258 = scalar_select %p257, %s18, 1
      %s259 = smul.addr %s258, 2
      %s260 = smul.addr %s259, 8
      %s261 = scalar_lea.vmem %s5, %s260
      %p262 = scmp.lt.s32.totalorder %s18, 1
      %s263 = scalar_select %p262, %s18, 1
      %s264 = smul.addr %s263, 2
      %s265 = smul.addr %s264, 8
      %s266 = scalar_lea.vmem %s6, %s265
      %v267 = vld [vmem:[%s255] sm:$0xff]
      %v268 = vld [vmem:[%s255 + $0x8] sm:$0xff]
      %271 = vrot.lane.b32.xlu0 %v267, 127
      %v272 = vpop.permute.xlu0 %271
      %273 = vrot.lane.b32.xlu0 %v268, 127
      %v274 = vpop.permute.xlu0 %273
      %vm275 = vcmask 1039360
      %v276 = vsel %vm275, %v272, %v274
      %279 = vrot.lane.b32.xlu0 %v267, 126
      %v280 = vpop.permute.xlu0 %279
      %281 = vrot.lane.b32.xlu0 %v268, 126
      %v282 = vpop.permute.xlu0 %281
      %vm283 = vcmask 1031168
      %v284 = vsel %vm283, %v280, %v282
      %287 = vrot.lane.b32.xlu0 %v267, 112
      %v288 = vpop.permute.xlu0 %287
      %289 = vrot.lane.b32.xlu0 %v268, 112
      %v290 = vpop.permute.xlu0 %289
      %vm291 = vcmask 916480
      %v292 = vsel %vm291, %v288, %v290
      %295 = vrot.lane.b32.xlu0 %v267, 111
      %v296 = vpop.permute.xlu0 %295
      %297 = vrot.lane.b32.xlu0 %v268, 111
      %v298 = vpop.permute.xlu0 %297
      %vm299 = vcmask 908288
      %v300 = vsel %vm299, %v296, %v298
      %303 = vrot.lane.b32.xlu0 %v267, 110
      %v304 = vpop.permute.xlu0 %303
      %305 = vrot.lane.b32.xlu0 %v268, 110
      %v306 = vpop.permute.xlu0 %305
      %vm307 = vcmask 900096
      %v308 = vsel %vm307, %v304, %v306
      %311 = vrot.lane.b32.xlu0 %v267, 96
      %v312 = vpop.permute.xlu0 %311
      %313 = vrot.lane.b32.xlu0 %v268, 96
      %v314 = vpop.permute.xlu0 %313
      %vm315 = vcmask 785408
      %v316 = vsel %vm315, %v312, %v314
      %319 = vrot.lane.b32.xlu0 %v267, 95
      %v320 = vpop.permute.xlu0 %319
      %321 = vrot.lane.b32.xlu0 %v268, 95
      %v322 = vpop.permute.xlu0 %321
      %vm323 = vcmask 777216
      %v324 = vsel %vm323, %v320, %v322
      %327 = vrot.lane.b32.xlu0 %v267, 94
      %v328 = vpop.permute.xlu0 %327
      %329 = vrot.lane.b32.xlu0 %v268, 94
      %v330 = vpop.permute.xlu0 %329
      %vm331 = vcmask 769024
      %v332 = vsel %vm331, %v328, %v330
      %v335 = vld [vmem:[%s1] sm:$0xff]
      %v336 = vld [vmem:[%s2] sm:$0xff]
      %338 = vset.pattern.permute.xlu0 0
      %339 = vperm.xlu0 %338, %v336
      %v340 = vpop.permute.xlu0 %339
      %vm342 = vcmask 588800
      %v344 = vsel %vm342, %v335, 0
      %346 = vmatprep.subr.mxu0 %v268
      %347 = vmatpush1.msra.mxu0 %v267
      %348 = vmatprep.subr.mxu0 %v274
      %349 = vmatpush1.msra.mxu0 %v276
      %350 = vmatprep.subr.mxu0 %v282
      %351 = vmatpush1.msra.mxu0 %v284
      %352 = vmatprep.subr.mxu0 %v290
      %353 = vmatpush1.msra.mxu0 %v292
      %354 = vmatprep.subr.mxu0 %v298
      %355 = vmatpush1.msra.mxu0 %v300
      %356 = vmatprep.subr.mxu0 %v306
      %357 = vmatpush1.msra.mxu0 %v308
      %358 = vmatprep.subr.mxu0 %v314
      %359 = vmatpush1.msra.mxu0 %v316
      %360 = vmatprep.subr.mxu0 %v322
      %361 = vmatpush1.msra.mxu0 %v324
      %362 = vmatprep.subr.mxu0 %v330
      %363 = vmatpush1.msra.mxu0 %v332
      %364 = vmatprep.subr.mxu0 0.0
      %365 = vmatpush1.msra.mxu0 0.0
      %366 = vmatprep.subr.mxu0 0.0
      %367 = vmatpush1.msra.mxu0 0.0
      %368 = vmatprep.subr.mxu0 0.0
      %369 = vmatpush1.msra.mxu0 0.0
      %370 = vmatprep.subr.mxu0 0.0
      %371 = vmatpush1.msra.mxu0 0.0
      %372 = vmatprep.subr.mxu0 0.0
      %373 = vmatpush1.msra.mxu0 0.0
      %374 = vmatprep.subr.mxu0 0.0
      %375 = vmatpush1.msra.mxu0 0.0
      %376 = vmatprep.subr.mxu0 0.0
      %377 = vmatpush1.msra.mxu0 0.0
      %378 = vmatprep.subr.mxu0 0.0
      %379 = vmatpush1.msra.mxu0 0.0
      %380 = vmatprep.subr.mxu0 0.0
      %381 = vmatpush1.msra.mxu0 0.0
      %382 = vmatprep.subr.mxu0 0.0
      %383 = vmatpush1.msra.mxu0 0.0
      %384 = vmatprep.subr.mxu0 0.0
      %385 = vmatpush1.msra.mxu0 0.0
      %386 = vmatprep.subr.mxu0 0.0
      %387 = vmatpush1.msra.mxu0 0.0
      %388 = vmatprep.subr.mxu0 0.0
      %389 = vmatpush1.msra.mxu0 0.0
      %390 = vmatprep.subr.mxu0 0.0
      %391 = vmatpush1.msra.mxu0 0.0
      %392 = vmatprep.subr.mxu0 0.0
      %393 = vmatpush1.msra.mxu0 0.0
      %394 = vmatprep.subr.mxu0 0.0
      %395 = vmatpush1.msra.mxu0 0.0
      %396 = vmatprep.subr.mxu0 0.0
      %397 = vmatpush1.msra.mxu0 0.0
      %398 = vmatprep.subr.mxu0 0.0
      %399 = vmatpush1.msra.mxu0 0.0
      %400 = vmatprep.subr.mxu0 0.0
      %401 = vmatpush1.msra.mxu0 0.0
      %402 = vmatprep.subr.mxu0 0.0
      %403 = vmatpush1.msra.mxu0 0.0
      %404 = vmatprep.subr.mxu0 0.0
      %405 = vmatpush1.msra.mxu0 0.0
      %406 = vmatprep.subr.mxu0 0.0
      %407 = vmatpush1.msra.mxu0 0.0
      %408 = vmatprep.subr.mxu0 0.0
      %409 = vmatpush1.msra.mxu0 0.0
      %410 = vmatprep.mubr.f32.mxu0 0.0
      %411 = vmatmul.mubr.f32.gmra.mrb[0].mxu0 %v344
      %v412 = vpop.f32.mrb[0].mxu0
      %v413 = vadd.f32 %v340, %v412
      %v414 = vpop.f32.mrb[0].mxu0
      %v415 = vadd.f32 %v340, %v414
      %416 = vdwg.mxu0
      %v417 = vmax.f32 %v413, 0.0
      %v418 = vmax.f32 %v415, 0.0
      %421 = vrot.lane.b32.xlu0 %v417, 127
      %v422 = vpop.permute.xlu0 %421
      %423 = vrot.lane.b32.xlu0 %v418, 127
      %v424 = vpop.permute.xlu0 %423
      %v425 = vsel %vm275, %v422, %v424
      %428 = vrot.lane.b32.xlu0 %v417, 126
      %v429 = vpop.permute.xlu0 %428
      %430 = vrot.lane.b32.xlu0 %v418, 126
      %v431 = vpop.permute.xlu0 %430
      %v432 = vsel %vm283, %v429, %v431
      %435 = vrot.lane.b32.xlu0 %v417, 112
      %v436 = vpop.permute.xlu0 %435
      %437 = vrot.lane.b32.xlu0 %v418, 112
      %v438 = vpop.permute.xlu0 %437
      %v439 = vsel %vm291, %v436, %v438
      %442 = vrot.lane.b32.xlu0 %v417, 111
      %v443 = vpop.permute.xlu0 %442
      %444 = vrot.lane.b32.xlu0 %v418, 111
      %v445 = vpop.permute.xlu0 %444
      %v446 = vsel %vm299, %v443, %v445
      %449 = vrot.lane.b32.xlu0 %v417, 110
      %v450 = vpop.permute.xlu0 %449
      %451 = vrot.lane.b32.xlu0 %v418, 110
      %v452 = vpop.permute.xlu0 %451
      %v453 = vsel %vm307, %v450, %v452
      %456 = vrot.lane.b32.xlu0 %v417, 96
      %v457 = vpop.permute.xlu0 %456
      %458 = vrot.lane.b32.xlu0 %v418, 96
      %v459 = vpop.permute.xlu0 %458
      %v460 = vsel %vm315, %v457, %v459
      %463 = vrot.lane.b32.xlu0 %v417, 95
      %v464 = vpop.permute.xlu0 %463
      %465 = vrot.lane.b32.xlu0 %v418, 95
      %v466 = vpop.permute.xlu0 %465
      %v467 = vsel %vm323, %v464, %v466
      %470 = vrot.lane.b32.xlu0 %v417, 94
      %v471 = vpop.permute.xlu0 %470
      %472 = vrot.lane.b32.xlu0 %v418, 94
      %v473 = vpop.permute.xlu0 %472
      %v474 = vsel %vm331, %v471, %v473
      %v477 = vld [vmem:[%s3] sm:$0xff]
      %v478 = vld [vmem:[%s4] sm:$0xff]
      %480 = vset.pattern.permute.xlu0 0
      %481 = vperm.xlu0 %480, %v478
      %v482 = vpop.permute.xlu0 %481
      %v485 = vsel %vm342, %v477, 0
      %487 = vmatprep.subr.mxu0 %v418
      %488 = vmatpush1.msra.mxu0 %v417
      %489 = vmatprep.subr.mxu0 %v424
      %490 = vmatpush1.msra.mxu0 %v425
      %491 = vmatprep.subr.mxu0 %v431
      %492 = vmatpush1.msra.mxu0 %v432
      %493 = vmatprep.subr.mxu0 %v438
      %494 = vmatpush1.msra.mxu0 %v439
      %495 = vmatprep.subr.mxu0 %v445
      %496 = vmatpush1.msra.mxu0 %v446
      %497 = vmatprep.subr.mxu0 %v452
      %498 = vmatpush1.msra.mxu0 %v453
      %499 = vmatprep.subr.mxu0 %v459
      %500 = vmatpush1.msra.mxu0 %v460
      %501 = vmatprep.subr.mxu0 %v466
      %502 = vmatpush1.msra.mxu0 %v467
      %503 = vmatprep.subr.mxu0 %v473
      %504 = vmatpush1.msra.mxu0 %v474
      %505 = vmatprep.subr.mxu0 0.0
      %506 = vmatpush1.msra.mxu0 0.0
      %507 = vmatprep.subr.mxu0 0.0
      %508 = vmatpush1.msra.mxu0 0.0
      %509 = vmatprep.subr.mxu0 0.0
      %510 = vmatpush1.msra.mxu0 0.0
      %511 = vmatprep.subr.mxu0 0.0
      %512 = vmatpush1.msra.mxu0 0.0
      %513 = vmatprep.subr.mxu0 0.0
      %514 = vmatpush1.msra.mxu0 0.0
      %515 = vmatprep.subr.mxu0 0.0
      %516 = vmatpush1.msra.mxu0 0.0
      %517 = vmatprep.subr.mxu0 0.0
      %518 = vmatpush1.msra.mxu0 0.0
      %519 = vmatprep.subr.mxu0 0.0
      %520 = vmatpush1.msra.mxu0 0.0
      %521 = vmatprep.subr.mxu0 0.0
      %522 = vmatpush1.msra.mxu0 0.0
      %523 = vmatprep.subr.mxu0 0.0
      %524 = vmatpush1.msra.mxu0 0.0
      %525 = vmatprep.subr.mxu0 0.0
      %526 = vmatpush1.msra.mxu0 0.0
      %527 = vmatprep.subr.mxu0 0.0
      %528 = vmatpush1.msra.mxu0 0.0
      %529 = vmatprep.subr.mxu0 0.0
      %530 = vmatpush1.msra.mxu0 0.0
      %531 = vmatprep.subr.mxu0 0.0
      %532 = vmatpush1.msra.mxu0 0.0
      %533 = vmatprep.subr.mxu0 0.0
      %534 = vmatpush1.msra.mxu0 0.0
      %535 = vmatprep.subr.mxu0 0.0
      %536 = vmatpush1.msra.mxu0 0.0
      %537 = vmatprep.subr.mxu0 0.0
      %538 = vmatpush1.msra.mxu0 0.0
      %539 = vmatprep.subr.mxu0 0.0
      %540 = vmatpush1.msra.mxu0 0.0
      %541 = vmatprep.subr.mxu0 0.0
      %542 = vmatpush1.msra.mxu0 0.0
      %543 = vmatprep.subr.mxu0 0.0
      %544 = vmatpush1.msra.mxu0 0.0
      %545 = vmatprep.subr.mxu0 0.0
      %546 = vmatpush1.msra.mxu0 0.0
      %547 = vmatprep.subr.mxu0 0.0
      %548 = vmatpush1.msra.mxu0 0.0
      %549 = vmatprep.subr.mxu0 0.0
      %550 = vmatpush1.msra.mxu0 0.0
      %551 = vmatprep.mubr.f32.mxu0 0.0
      %552 = vmatmul.mubr.f32.gmra.mrb[0].mxu0 %v485
      %v553 = vpop.f32.mrb[0].mxu0
      %v554 = vadd.f32 %v482, %v553
      %v555 = vpop.f32.mrb[0].mxu0
      %v556 = vadd.f32 %v482, %v555
      %557 = vdwg.mxu0
      %v558 = vmax.f32 %v554, 0.0
      %v559 = vmax.f32 %v556, 0.0
      %560 = vst [vmem:[%s266] sm:$0xff] %v558
      %vm561 = vcmask 490496
      %562 = vst.msk [vmem:[%s266 + $0x8] sm:$0xff] %vm561, %v559
      %565 = vrot.lane.b32.xlu0 %v558, 127
      %v566 = vpop.permute.xlu0 %565
      %567 = vrot.lane.b32.xlu0 %v559, 127
      %v568 = vpop.permute.xlu0 %567
      %v569 = vsel %vm275, %v566, %v568
      %v572 = vmax.f32 %v558, %v569
      %v573 = vmax.f32 %v559, %v568
      %576 = vrot.lane.b32.xlu0 %v572, 112
      %v577 = vpop.permute.xlu0 %576
      %578 = vrot.lane.b32.xlu0 %v573, 112
      %v579 = vpop.permute.xlu0 %578
      %v580 = vsel %vm291, %v577, %v579
      %v583 = vmax.f32 %v572, %v580
      %v584 = vmax.f32 %v573, %v579
      %585 = vst [vmem:[%s261] sm:$0xff] %v583
      %vm586 = vcmask 351232
      %587 = vst.msk [vmem:[%s261 + $0x8] sm:$0xff] %vm586, %v584
      %p588 = scmp.lt.s32.totalorder %s18, 1
      %s589 = scalar_select %p588, %s18, 1
      %s590 = smul.addr %s589, 2
      %s591 = smul.addr %s590, 8
      %s592 = scalar_lea.vmem %s5, %s591
      %p593 = scmp.lt.s32.totalorder %s18, 1
      %s594 = scalar_select %p593, %s18, 1
      %s595 = smul.addr %s594, 2
      %s596 = smul.addr %s595, 8
      %s597 = scalar_lea.vmem %s6, %s596
      // Predicated region
      $region41: #{down_forward.1} parent=39 // pred_check
        %p598 = pneg %p146
      $region42: #{down_forward.1} parent=39 // pred_check_branch
        %600 = sbr.rel (%p598) target = $region44
      $region43: #{down_forward.1} parent=39 // pred_region
        _
      $region44: #{down_forward.1} parent=39 // pred_fallthru
        _
      // Predicated region
      $region45: #{down_forward.1} parent=39 // pred_check
        %p601 = pneg %p172
      $region46: #{down_forward.1} parent=39 // pred_check_branch
        %603 = sbr.rel (%p601) target = $region48
      $region47: #{down_forward.1} parent=39 // pred_region
        _
      $region48: #{down_forward.1} parent=39 // pred_fallthru
        _
    $region40: #{down_forward.1} parent=5 // pred_fallthru
      _
    %p604 = scmp.le.s32.totalorder 2, %s13
    // Predicated region
    $region49: #{down_forward.1} parent=5 // pred_check
      %p605 = pneg %p604
    $region50: #{down_forward.1} parent=5 // pred_check_branch
      %607 = sbr.rel (%p605) target = $region52
    $region51: #{down_forward.1} parent=5 // pred_region
      %s608 = ssub.s32 %s13, 2
      // Predicated region
      $region53: #{down_forward.1} parent=51 // pred_check
        %p609 = pneg %p152
      $region54: #{down_forward.1} parent=51 // pred_check_branch
        %611 = sbr.rel (%p609) target = $region56
      $region55: #{down_forward.1} parent=51 // pred_region
        %p612 = scmp.lt.s32.totalorder %s19, 1
        %s613 = scalar_select %p612, %s19, 1
        %s614 = smul.addr %s613, 2
        %s615 = smul.addr %s614, 8
        %s616 = scalar_lea.vmem %s5, %s615
      $region56: #{down_forward.1} parent=51 // pred_fallthru
        _
      // Predicated region
      $region57: #{down_forward.1} parent=51 // pred_check
        %p617 = pneg %p178
      $region58: #{down_forward.1} parent=51 // pred_check_branch
        %619 = sbr.rel (%p617) target = $region60
      $region59: #{down_forward.1} parent=51 // pred_region
        %p620 = scmp.lt.s32.totalorder %s19, 1
        %s621 = scalar_select %p620, %s19, 1
        %s622 = smul.addr %s621, 2
        %s623 = smul.addr %s622, 8
        %s624 = scalar_lea.vmem %s6, %s623
      $region60: #{down_forward.1} parent=51 // pred_fallthru
        _
    $region52: #{down_forward.1} parent=5 // pred_fallthru
      _
  $region6: #{down_forward.1} parent=0 // loop_footer
    %s17 = sadd.s32 1, %s13
  $region7: #{down_forward.1} parent=0 // loop_footer_branch
    %12 = sbr.rel target = $region3
  $region8: #{down_forward.1} parent=0 // loop_exit
    _

</llo_original>
